<compile_context>
chip_gen: v7x
topology: tpu7x:2x2x1
jax: 0.10.0
libtpu: 0.0.40
codegen_flags: <defaults>
</compile_context>

<pallas_src>
import functools

import jax
import jax.numpy as jnp
from jax import lax
from jax.experimental import pallas as pl
from jax.experimental.pallas import tpu as pltpu

EPS = 1e-6


def _round_up(v: int, m: int) -> int:
    return (v + m - 1) // m * m


def _cdiv(a: int, b: int) -> int:
    return -(-a // b)


# ----------------------------------------------------------------------------
# Kernels
# ----------------------------------------------------------------------------
def prenorm_linear_kernel(x_ref, w_ref, b_ref, o_ref):
    """Resident-weight path: grid over row tiles only.

    LayerNorm (two-pass, f32, eps=1e-6) -> bf16 cast -> (tm, D) @ (D, H) on the
    MXU with f32 accumulation -> + folded bias.  gamma/beta already folded into
    w_ref / b_ref by the wrapper.
    """
    x = x_ref[...].astype(jnp.float32)                         # (tm, D)
    mean = jnp.mean(x, axis=-1, keepdims=True)                 # (tm, 1)
    xc = x - mean
    var = jnp.mean(xc * xc, axis=-1, keepdims=True)            # biased variance
    xn = xc * lax.rsqrt(var + EPS)                             # (tm, D)

    y = jnp.dot(xn.astype(w_ref.dtype), w_ref[...],
                preferred_element_type=jnp.float32)            # (tm, H), f32 acc
    o_ref[...] = (y + b_ref[...]).astype(o_ref.dtype)


def prenorm_linear_htiled_kernel(x_ref, w_ref, b_ref, o_ref, xn_ref):
    """H-tiled fallback (very large W): LayerNorm cached across the H axis.

    LN is computed only at j == 0 and stored in a bf16 VMEM scratch; every H
    tile reuses it.  Requires the H axis to be the innermost ("arbitrary")
    grid axis so the scratch stays valid across j.
    """
    @pl.when(pl.program_id(1) == 0)
    def _():
        x = x_ref[...].astype(jnp.float32)                     # (tm, D)
        mean = jnp.mean(x, axis=-1, keepdims=True)
        xc = x - mean
        var = jnp.mean(xc * xc, axis=-1, keepdims=True)
        xn_ref[...] = (xc * lax.rsqrt(var + EPS)).astype(xn_ref.dtype)

    y = jnp.dot(xn_ref[...], w_ref[...],
                preferred_element_type=jnp.float32)            # (tm, tn)
    o_ref[...] = (y + b_ref[...]).astype(o_ref.dtype)


# ----------------------------------------------------------------------------
# Wrapper
# ----------------------------------------------------------------------------
@functools.partial(jax.jit,
                   static_argnames=("tile_rows", "tile_h", "force_h_tiling",
                                    "out_dtype"))
def prenorm_forward(x, gamma, beta, w, wb, *, tile_rows=512, tile_h=512,
                    force_h_tiling=False, out_dtype=None):
    """y = Linear(LayerNorm(x, eps=1e-6));  x: (B, N, D), w: (D, H).

    out_dtype defaults to x.dtype; pass jnp.bfloat16 if the consumer (e.g. the
    MLP's GELU) accepts it -- halves the dominant HBM write on v6e/v7x.
    """
    B, N, D = x.shape
    H = w.shape[1]
    rows = B * N
    out_dtype = x.dtype if out_dtype is None else out_dtype
    x_bytes = jnp.dtype(x.dtype).itemsize
    o_bytes = jnp.dtype(out_dtype).itemsize

    # Fold the LayerNorm affine into the Linear weight / bias once (f32, then
    # the weight is cast to bf16 for the MXU):
    #   ((x-mu)*inv*gamma + beta) @ W + b
    #     == ((x-mu)*inv) @ (gamma[:,None]*W)  +  (beta @ W + b)
    w_folded = (gamma.reshape(D, 1) * w).astype(jnp.bfloat16)      # (D, H)
    b_folded = (beta.reshape(1, D) @ w + wb.reshape(1, H)).astype(jnp.float32)

    x2 = x.reshape(rows, D)   # metadata-only reshape, no HBM traffic

    # Keep W fully resident unless it is genuinely large (bf16 W > 12 MiB
    # covers every standard ViT MLP, e.g. ViT-B 768x3072 = 4.5 MiB).
    use_h_tiling = force_h_tiling or (D * H * 2 > 12 * 1024 * 1024)

    # Balanced row tiles; guarantee >= 2 row tiles (v7x has 2 TensorCores).
    # If H stays tiled, larger row tiles (>=768) cover the per-j W-slice DMA.
    eff_tile_rows = max(tile_rows, 768) if use_h_tiling else tile_rows
    n_row_tiles = max(1, _cdiv(rows, eff_tile_rows))
    if n_row_tiles == 1 and rows >= 16:
        n_row_tiles = 2
    tm = min(_round_up(_cdiv(rows, n_row_tiles), 8), _round_up(rows, 8))
    grid_rows = _cdiv(rows, tm)   # ragged last tile handled by partial blocks
    # NOTE: out-of-range rows of the last partial tile read garbage; LN + the
    # matmul are row-independent and those output rows are masked on store, so
    # no contamination of valid rows (invariant required by this no-pad path).

    cost = pl.CostEstimate(
        flops=2 * rows * D * H,
        transcendentals=rows,                                   # rsqrt per row
        bytes_accessed=rows * D * x_bytes + D * H * 2 + H * 4 + rows * H * o_bytes,
    )

    if not use_h_tiling:
        # ---------------- resident-weight path: grid over rows only ----------
        block_bytes = (
            2 * tm * D * x_bytes            # x tile (double-buffered)
            + D * H * 2                     # resident bf16 weight
            + H * 4                         # folded bias
            + 2 * tm * H * o_bytes          # out tile (double-buffered)
            + tm * D * 10 + tm * H * 4      # f32/bf16 intermediates (x, xc, xn, y)
        )
        vmem_limit = int(min(max(block_bytes * 3 // 2, 16 * 1024 * 1024),
                             48 * 1024 * 1024))

        out = pl.pallas_call(
            prenorm_linear_kernel,
            out_shape=jax.ShapeDtypeStruct((rows, H), out_dtype),
            grid_spec=pltpu.PrefetchScalarGridSpec(
                num_scalar_prefetch=0,
                grid=(grid_rows,),
                in_specs=[
                    pl.BlockSpec((tm, D), lambda i: (i, 0)),    # x row tile
                    pl.BlockSpec((D, H), lambda i: (0, 0)),     # W, DMA'd once
                    pl.BlockSpec((1, H), lambda i: (0, 0)),     # folded bias
                ],
                out_specs=pl.BlockSpec((tm, H), lambda i: (i, 0)),
            ),
            compiler_params=pltpu.CompilerParams(
                dimension_semantics=("parallel",),
                vmem_limit_bytes=vmem_limit,
            ),
            cost_estimate=cost,
        )(x2, w_folded, b_folded)
    else:
        # ---------------- H-tiled fallback with cached LayerNorm -------------
        tn = _round_up(tile_h, 128)
        if tn >= H:
            tn = H                           # full-dim block is always legal
        grid_h = _cdiv(H, tn)

        block_bytes = (
            2 * tm * D * x_bytes             # x tile
            + 2 * D * tn * 2                 # bf16 W slice (double-buffered)
            + 2 * tn * 4                     # bias slice
            + 2 * tm * tn * o_bytes          # out tile
            + tm * D * 2                     # bf16 xn scratch
            + tm * D * 10 + tm * tn * 4      # in-kernel intermediates
        )
        vmem_limit = int(min(max(block_bytes * 3 // 2, 16 * 1024 * 1024),
                             48 * 1024 * 1024))

        out = pl.pallas_call(
            prenorm_linear_htiled_kernel,
            out_shape=jax.ShapeDtypeStruct((rows, H), out_dtype),
            grid_spec=pltpu.PrefetchScalarGridSpec(
                num_scalar_prefetch=0,
                grid=(grid_rows, grid_h),
                in_specs=[
                    pl.BlockSpec((tm, D), lambda i, j: (i, 0)),  # x row tile
                    pl.BlockSpec((D, tn), lambda i, j: (0, j)),  # W slice
                    pl.BlockSpec((1, tn), lambda i, j: (0, j)),  # bias slice
                ],
                out_specs=pl.BlockSpec((tm, tn), lambda i, j: (i, j)),
                scratch_shapes=[pltpu.VMEM((tm, D), jnp.bfloat16)],  # cached xn
            ),
            compiler_params=pltpu.CompilerParams(
                # H axis must be "arbitrary": the xn scratch carries across j.
                dimension_semantics=("parallel", "arbitrary"),
                vmem_limit_bytes=vmem_limit,
            ),
            cost_estimate=cost,
        )(x2, w_folded, b_folded)

    return out.reshape(B, N, H)


# ----------------------------------------------------------------------------
# References
# ----------------------------------------------------------------------------
def prenorm_reference(x, gamma, beta, w, wb, mxu_dtype=jnp.bfloat16):
    """Pure-JAX reference. mxu_dtype=None -> full-f32 (true module semantics);
    mxu_dtype=bf16 -> precision-matched to the kernel (same gamma/beta folding)."""
    xf = x.astype(jnp.float32)
    mean = jnp.mean(xf, axis=-1, keepdims=True)
    var = jnp.mean((xf - mean) ** 2, axis=-1, keepdims=True)
    xn = (xf - mean) * lax.rsqrt(var + EPS)
    if mxu_dtype is not None:
        wf = (gamma.reshape(-1, 1) * w).astype(mxu_dtype)
        bf = beta.reshape(1, -1) @ w + wb.reshape(1, -1)
        y = jnp.dot(xn.astype(mxu_dtype), wf,
                    preferred_element_type=jnp.float32) + bf
    else:
        y = (xn * gamma.reshape(-1) + beta.reshape(-1)) @ w + wb.reshape(-1)
    return y.astype(x.dtype)


if __name__ == "__main__":
    key = jax.random.PRNGKey(0)
    # Small but lane-aligned ViT-ish shapes: batch=2, seq=64, dim=256, hidden=512.
    B, N, D, H = 2, 64, 256, 512

    k_x, k_g, k_b, k_w, k_wb = jax.random.split(key, 5)
    x = jax.random.normal(k_x, (B, N, D), dtype=jnp.float32)

    # LayerNorm parameters (perturbed from the default init so the affine path
    # is actually exercised).
    gamma = (1.0 + 0.1 * jax.random.normal(k_g, (1, D))).astype(jnp.float32)
    beta = (0.1 * jax.random.normal(k_b, (1, D))).astype(jnp.float32)

    # fn = Linear(D, H) parameters, deterministic init.
    w = (jax.random.normal(k_w, (D, H)) * (1.0 / D ** 0.5)).astype(jnp.float32)
    wb = (0.02 * jax.random.normal(k_wb, (1, H))).astype(jnp.float32)

    # --- resident-weight (default) path --------------------------------------
    out = prenorm_forward(x, gamma, beta, w, wb)
    jax.block_until_ready(out)
    assert out.shape == (B, N, H)

    ref_bf16 = prenorm_reference(x, gamma, beta, w, wb, mxu_dtype=jnp.bfloat16)
    assert jnp.allclose(out, ref_bf16, atol=5e-3, rtol=5e-3), "mismatch vs matched ref"

    ref_f32 = prenorm_reference(x, gamma, beta, w, wb, mxu_dtype=None)
    assert jnp.allclose(out, ref_f32, atol=5e-2, rtol=5e-2), "mismatch vs f32 ref"

    # --- H-tiled fallback path (cached LayerNorm across H tiles) --------------
    out_ht = prenorm_forward(x, gamma, beta, w, wb, tile_h=128,
                             force_h_tiling=True)
    jax.block_until_ready(out_ht)
    assert out_ht.shape == (B, N, H)
    assert jnp.allclose(out_ht, ref_bf16, atol=5e-3, rtol=5e-3), "htiled mismatch"

    print("KERNEL_OK")
</pallas_src>

<mosaic_0001>
module attributes {stable_mosaic.version = 11 : i64} {
  func.func @prenorm_linear_kernel(%arg0: i32, %arg1: memref<64x256xf32, #tpu.memory_space<vmem>>, %arg2: memref<256x512xbf16, #tpu.memory_space<vmem>>, %arg3: memref<1x512xf32, #tpu.memory_space<vmem>>, %arg4: memref<64x512xf32, #tpu.memory_space<vmem>>) attributes {dimension_semantics = [#tpu.dimension_semantics<parallel>], iteration_bounds = array<i64: 2>, scalar_prefetch = 0 : i64, scratch_operands = 0 : i64, tpu.core_type = #tpu.core_type<tc>, window_params = [{transform_indices = @transform_0, window_bounds = array<i64: 64, 256>}, {pipeline_mode = #tpu.pipeline_mode<synchronous>, transform_indices = @transform_1, window_bounds = array<i64: 256, 512>}, {pipeline_mode = #tpu.pipeline_mode<synchronous>, transform_indices = @transform_2, window_bounds = array<i64: 1, 512>}, {transform_indices = @transform_3, window_bounds = array<i64: 64, 512>}]} {
    %c0 = arith.constant 0 : index
    %c0_0 = arith.constant 0 : index
    %0 = vector.load %arg1[%c0, %c0_0] : memref<64x256xf32, #tpu.memory_space<vmem>>, vector<64x256xf32>
    %cst = arith.constant dense<0.000000e+00> : vector<64xf32>
    %1 = vector.multi_reduction <add>, %0, %cst [1] : vector<64x256xf32> to vector<64xf32>
    %2 = vector.shape_cast %1 : vector<64xf32> to vector<64x1xf32>
    %cst_1 = arith.constant 2.560000e+02 : f32
    %3 = vector.broadcast %cst_1 : f32 to vector<64x1xf32>
    %4 = arith.divf %2, %3 : vector<64x1xf32>
    %5 = vector.broadcast %4 : vector<64x1xf32> to vector<64x256xf32>
    %6 = arith.subf %0, %5 : vector<64x256xf32>
    %7 = arith.mulf %6, %6 : vector<64x256xf32>
    %cst_2 = arith.constant dense<0.000000e+00> : vector<64xf32>
    %8 = vector.multi_reduction <add>, %7, %cst_2 [1] : vector<64x256xf32> to vector<64xf32>
    %9 = vector.shape_cast %8 : vector<64xf32> to vector<64x1xf32>
    %cst_3 = arith.constant 2.560000e+02 : f32
    %10 = vector.broadcast %cst_3 : f32 to vector<64x1xf32>
    %11 = arith.divf %9, %10 : vector<64x1xf32>
    %cst_4 = arith.constant 9.99999997E-7 : f32
    %12 = vector.broadcast %cst_4 : f32 to vector<64x1xf32>
    %13 = arith.addf %11, %12 : vector<64x1xf32>
    %14 = math.rsqrt %13 : vector<64x1xf32>
    %15 = vector.broadcast %14 : vector<64x1xf32> to vector<64x256xf32>
    %16 = arith.mulf %6, %15 : vector<64x256xf32>
    %17 = arith.truncf %16 : vector<64x256xf32> to vector<64x256xbf16>
    %c0_5 = arith.constant 0 : index
    %c0_6 = arith.constant 0 : index
    %18 = vector.load %arg2[%c0_5, %c0_6] : memref<256x512xbf16, #tpu.memory_space<vmem>>, vector<256x512xbf16>
    %cst_7 = arith.constant dense<0.000000e+00> : vector<64x512xf32>
    %19 = tpu.matmul %17, %18, %cst_7 {dimension_numbers = #tpu.dot_dimension_numbers<[1], [0], [0], [1], [0, 0, 1, 1], [], []>} : vector<64x256xbf16>, vector<256x512xbf16>, vector<64x512xf32> -> vector<64x512xf32>
    %c0_8 = arith.constant 0 : index
    %c0_9 = arith.constant 0 : index
    %20 = vector.load %arg3[%c0_8, %c0_9] : memref<1x512xf32, #tpu.memory_space<vmem>>, vector<1x512xf32>
    %21 = vector.broadcast %20 : vector<1x512xf32> to vector<64x512xf32>
    %22 = arith.addf %19, %21 : vector<64x512xf32>
    %c0_10 = arith.constant 0 : index
    %c0_11 = arith.constant 0 : index
    %23 = vector.load %arg4[%c0_10, %c0_11] : memref<64x512xf32, #tpu.memory_space<vmem>>, vector<64x512xf32>
    tpu.vector_store %arg4[%c0_10, %c0_11], %22 {strides = array<i32>} : memref<64x512xf32, #tpu.memory_space<vmem>>, vector<64x512xf32>,
    return
  }
  func.func @transform_0(%arg0: i32) -> (i32, i32) {
    %c0_i32 = arith.constant 0 : i32
    %c0_i32_0 = arith.constant 0 : i32
    return %arg0, %c0_i32 : i32, i32
  }
  func.func @transform_1(%arg0: i32) -> (i32, i32) {
    %c0_i32 = arith.constant 0 : i32
    %c0_i32_0 = arith.constant 0 : i32
    %c0_i32_1 = arith.constant 0 : i32
    return %c0_i32, %c0_i32_0 : i32, i32
  }
  func.func @transform_2(%arg0: i32) -> (i32, i32) {
    %c0_i32 = arith.constant 0 : i32
    %c0_i32_0 = arith.constant 0 : i32
    %c0_i32_1 = arith.constant 0 : i32
    return %c0_i32, %c0_i32_0 : i32, i32
  }
  func.func @transform_3(%arg0: i32) -> (i32, i32) {
    %c0_i32 = arith.constant 0 : i32
    %c0_i32_0 = arith.constant 0 : i32
    return %arg0, %c0_i32 : i32, i32
  }
}

</mosaic_0001>

<llo_original>
// kernel: prenorm_forward.1
$region0: #{prenorm_forward.1}
  #allocation0 [shape = 'u32[]', space=smem, size = 0x4, offset = 0x4, fixed_abs, tag = 'smem constant byte address 0x4 - core index']
  #allocation1 [shape = 'u32[144,128]{1,0:T(1,128)}', space=vmem, size = 0x12000, scoped, tag = 'internal scratch']
  %s0 = inlined_call_operand.vmem [shape: f32[128,256], index: 0, kind: input, shape index: {}]
  %s1 = inlined_call_operand.vmem [shape: bf16[256,512], index: 1, kind: input, shape index: {}]
  %s2 = inlined_call_operand.vmem [shape: f32[1,512], index: 2, kind: input, shape index: {}]
  %s3 = inlined_call_operand.hbm [shape: f32[128,512], index: 3, kind: output, shape index: {}]
  %s4 = sld [smem:[#allocation0]]
  $region45: #{prenorm_forward.1} parent=0
    _
  %s6 = ssub.s32 1, %s4
  %s7 = scalar_select 0, %s6, %s4
  $region1: #{prenorm_forward.1} parent=0
    #allocation2 [shape = 'u8[262144]{0}', space=vmem, size = 0x40000, scoped, tag = 'output window, operand 0']
    #allocation3 [shape = 's32[2]{0}', space=sflag, size = 0x8, scoped, tag = 'scoped memory for prenorm_forward.1']
    %8 = vsyncpa [#allocation3], 0
    %s9 = scalar_lea.sflag [#allocation3], 1
    %10 = vsyncpa %s9, 0
    loop: start=0, step=1, limit=4
    $region2: #{prenorm_forward.1} parent=1 // loop_pre_header
      _
    $region3: #{prenorm_forward.1} parent=1 // loop_header
      %s12 = sphi 0, %s16
      %p13 = scmp.ge.s32.totalorder %s12, 4
      %s22 = sphi 0, %s24
      %s25 = sphi 0, %s22
      %s26 = sphi 0, %s25
      %s42 = sphi 0, %s26
      %s46 = sphi 0, %s46
      %s48 = sphi 0, %s46
      %s49 = sphi 0, %s48
      %s63 = sphi 0, %s49
      %s67 = sphi 0, %s67
      %s69 = sphi 0, %s67
      %s70 = sphi 0, %s69
      %s84 = sphi 0, %s70
      %s90 = sphi 0, %s92
      %s93 = sphi 0, %s90
      %s94 = sphi 0, %s93
      %s110 = sphi 0, %s94
    $region4: #{prenorm_forward.1} parent=1 // loop_header_branch
      %15 = sbr.rel (%p13) target = $region8
    $region5: #{prenorm_forward.1} parent=1 // loop_body
      %s17 = ssub.s32 %s12, 1
      %s18 = ssub.s32 %s12, 2
      %s19 = sadd.s32 %s12, 1
      %s20 = ssub.s32 %s12, %s19
      %p21 = scmp.eq.s32.totalorder %s20, 0
      %s23 = sadd.s32 %s22, 1
      %s24 = scalar_select %p21, %s22, %s23
      %p27 = pneg %p21
      %p28 = scmp.eq.s32.totalorder %s12, 1
      %p29 = por %p27, %p28
      %p30 = scmp.ne.s32.totalorder %s22, %s25
      %p31 = scmp.eq.s32.totalorder %s12, 0
      %p32 = por %p30, %p31
      %p33 = scmp.ne.s32.totalorder %s22, %s25
      %p34 = scmp.eq.s32.totalorder %s17, 1
      %p35 = por %p33, %p34
      %p36 = scmp.ne.s32.totalorder %s25, %s26
      %p37 = scmp.eq.s32.totalorder %s17, 0
      %p38 = por %p36, %p37
      %p39 = scmp.ne.s32.totalorder %s25, %s26
      %p40 = scmp.eq.s32.totalorder %s18, 1
      %p41 = por %p39, %p40
      %p43 = scmp.ne.s32.totalorder %s26, %s42
      %p44 = scmp.eq.s32.totalorder %s18, 0
      %p45 = por %p43, %p44
      %s47 = sadd.s32 %s46, 1
      %p50 = scmp.eq.s32.totalorder %s12, 1
      %p51 = scmp.ne.s32.totalorder %s46, %s48
      %p52 = scmp.eq.s32.totalorder %s12, 0
      %p53 = por %p51, %p52
      %p54 = scmp.ne.s32.totalorder %s46, %s48
      %p55 = scmp.eq.s32.totalorder %s17, 1
      %p56 = por %p54, %p55
      %p57 = scmp.ne.s32.totalorder %s48, %s49
      %p58 = scmp.eq.s32.totalorder %s17, 0
      %p59 = por %p57, %p58
      %p60 = scmp.ne.s32.totalorder %s48, %s49
      %p61 = scmp.eq.s32.totalorder %s18, 1
      %p62 = por %p60, %p61
      %p64 = scmp.ne.s32.totalorder %s49, %s63
      %p65 = scmp.eq.s32.totalorder %s18, 0
      %p66 = por %p64, %p65
      %s68 = sadd.s32 %s67, 1
      %p71 = scmp.eq.s32.totalorder %s12, 1
      %p72 = scmp.ne.s32.totalorder %s67, %s69
      %p73 = scmp.eq.s32.totalorder %s12, 0
      %p74 = por %p72, %p73
      %p75 = scmp.ne.s32.totalorder %s67, %s69
      %p76 = scmp.eq.s32.totalorder %s17, 1
      %p77 = por %p75, %p76
      %p78 = scmp.ne.s32.totalorder %s69, %s70
      %p79 = scmp.eq.s32.totalorder %s17, 0
      %p80 = por %p78, %p79
      %p81 = scmp.ne.s32.totalorder %s69, %s70
      %p82 = scmp.eq.s32.totalorder %s18, 1
      %p83 = por %p81, %p82
      %p85 = scmp.ne.s32.totalorder %s70, %s84
      %p86 = scmp.eq.s32.totalorder %s18, 0
      %p87 = por %p85, %p86
      %s88 = ssub.s32 %s12, %s19
      %p89 = scmp.eq.s32.totalorder %s88, 0
      %s91 = sadd.s32 %s90, 1
      %s92 = scalar_select %p89, %s90, %s91
      %p95 = pneg %p89
      %p96 = scmp.eq.s32.totalorder %s12, 1
      %p97 = por %p95, %p96
      %p98 = scmp.ne.s32.totalorder %s90, %s93
      %p99 = scmp.eq.s32.totalorder %s12, 0
      %p100 = por %p98, %p99
      %p101 = scmp.ne.s32.totalorder %s90, %s93
      %p102 = scmp.eq.s32.totalorder %s17, 1
      %p103 = por %p101, %p102
      %p104 = scmp.ne.s32.totalorder %s93, %s94
      %p105 = scmp.eq.s32.totalorder %s17, 0
      %p106 = por %p104, %p105
      %p107 = scmp.ne.s32.totalorder %s93, %s94
      %p108 = scmp.eq.s32.totalorder %s18, 1
      %p109 = por %p107, %p108
      %p111 = scmp.ne.s32.totalorder %s94, %s110
      %p112 = scmp.eq.s32.totalorder %s18, 0
      %p113 = por %p111, %p112
      %p114 = scmp.le.s32.totalorder 1, %s12
      %p115 = scmp.lt.s32.totalorder %s12, 3
      %p116 = pnand %p114, %p115
      %p117 = pneg %p116
      // Predicated region
      $region9: #{prenorm_forward.1} parent=5 // pred_check
        _
      $region10: #{prenorm_forward.1} parent=5 // pred_check_branch
        %119 = sbr.rel (%p116) target = $region12
      $region11: #{prenorm_forward.1} parent=5 // pred_region
        %s120 = ssub.s32 %s12, 1
        // Predicated region
        $region13: #{prenorm_forward.1} parent=11 // pred_check
          %p121 = pneg %p59
        $region14: #{prenorm_forward.1} parent=11 // pred_check_branch
          %123 = sbr.rel (%p121) target = $region16
        $region15: #{prenorm_forward.1} parent=11 // pred_region
          _
        $region16: #{prenorm_forward.1} parent=11 // pred_fallthru
          _
        // Predicated region
        $region17: #{prenorm_forward.1} parent=11 // pred_check
          %p124 = pneg %p80
        $region18: #{prenorm_forward.1} parent=11 // pred_check_branch
          %126 = sbr.rel (%p124) target = $region20
        $region19: #{prenorm_forward.1} parent=11 // pred_region
          _
        $region20: #{prenorm_forward.1} parent=11 // pred_fallthru
          _
      $region12: #{prenorm_forward.1} parent=5 // pred_fallthru
        _
      %p127 = scmp.lt.s32.totalorder %s12, 2
      // Predicated region
      $region21: #{prenorm_forward.1} parent=5 // pred_check
        %p128 = pneg %p127
      $region22: #{prenorm_forward.1} parent=5 // pred_check_branch
        %130 = sbr.rel (%p128) target = $region24
      $region23: #{prenorm_forward.1} parent=5 // pred_region
        // Predicated region
        $region25: #{prenorm_forward.1} parent=23 // pred_check
          %p131 = pneg %p32
        $region26: #{prenorm_forward.1} parent=23 // pred_check_branch
          %133 = sbr.rel (%p131) target = $region28
        $region27: #{prenorm_forward.1} parent=23 // pred_region
          %s134 = smul.u32 8, %s12
          %p135 = scmp.lt.s32.totalorder %s134, 15
          %s136 = scalar_select %p135, %s134, 15
          %s137 = smul.addr %s136, 2
          %s138 = smul.addr %s137, 8
          %s139 = scalar_lea.vmem %s0, %s138
          %s140 = smul.u32 8, %s12
        $region28: #{prenorm_forward.1} parent=23 // pred_fallthru
          _
      $region24: #{prenorm_forward.1} parent=5 // pred_fallthru
        _
      %p141 = scmp.le.s32.totalorder 1, %s12
      %p142 = scmp.lt.s32.totalorder %s12, 3
      %p143 = pnand %p141, %p142
      %p144 = pneg %p143
      // Predicated region
      $region29: #{prenorm_forward.1} parent=5 // pred_check
        _
      $region30: #{prenorm_forward.1} parent=5 // pred_check_branch
        %146 = sbr.rel (%p143) target = $region32
      $region31: #{prenorm_forward.1} parent=5 // pred_region
        %s147 = ssub.s32 %s12, 1
        %s148 = smul.u32 8, %s17
        %p149 = scmp.lt.s32.totalorder %s148, 15
        %s150 = scalar_select %p149, %s148, 15
        %s151 = smul.addr %s150, 2
        %s152 = smul.addr %s151, 8
        %s153 = scalar_lea.vmem %s0, %s152
        %p154 = pneg %p38
        %p155 = pneg %p35
        %p156 = pneg %p59
        %p157 = pneg %p56
        %p158 = pneg %p80
        %p159 = pneg %p77
        %p160 = pneg %p106
        %p161 = pneg %p103
        %s162 = sand.u32 %s93, 1
        %s163 = scalar_lea.sflag [#allocation3], %s162
        %s164 = sand.u32 %s93, 1
        %s165 = smul.addr %s164, 256
        %s166 = scalar_lea.vmem [#allocation2], %s165
        %s167 = smul.u32 8, %s17
        %p168 = scmp.lt.s32.totalorder %s167, 15
        %s169 = scalar_select %p168, %s167, 15
        %s170 = smul.addr %s169, 2
        %s171 = smul.addr %s170, 8
        %s172 = scalar_lea.vmem %s0, %s171
        %s173 = smul.u32 8, %s17
        %s174 = smul.u32 8, %s17
        %v175 = vld [vmem:[%s172] sm:$0xff]
        %v176 = vld [vmem:[%s172 + $0x8] sm:$0xff]
        %v177 = vld [vmem:[%s172 + $0x10] sm:$0xff]
        %v178 = vld [vmem:[%s172 + $0x18] sm:$0xff]
        %v179 = vld [vmem:[%s172 + $0x20] sm:$0xff]
        %v180 = vld [vmem:[%s172 + $0x28] sm:$0xff]
        %v181 = vld [vmem:[%s172 + $0x30] sm:$0xff]
        %v182 = vld [vmem:[%s172 + $0x38] sm:$0xff]
        %v183 = vld [vmem:[%s172 + $0x40] sm:$0xff]
        %v184 = vld [vmem:[%s172 + $0x48] sm:$0xff]
        %v185 = vld [vmem:[%s172 + $0x50] sm:$0xff]
        %v186 = vld [vmem:[%s172 + $0x58] sm:$0xff]
        %v187 = vld [vmem:[%s172 + $0x60] sm:$0xff]
        %v188 = vld [vmem:[%s172 + $0x68] sm:$0xff]
        %v189 = vld [vmem:[%s172 + $0x70] sm:$0xff]
        %v190 = vld [vmem:[%s172 + $0x78] sm:$0xff]
        %v191 = vadd.f32 %v175, %v176
        %192 = vadd.xlane.f32.xlu0 %v191
        %v193 = vpop.xlane.xlu0 %192
        %v194 = vadd.f32 %v177, %v178
        %195 = vadd.xlane.f32.xlu0 %v194
        %v196 = vpop.xlane.xlu0 %195
        %v197 = vadd.f32 %v179, %v180
        %198 = vadd.xlane.f32.xlu0 %v197
        %v199 = vpop.xlane.xlu0 %198
        %v200 = vadd.f32 %v181, %v182
        %201 = vadd.xlane.f32.xlu0 %v200
        %v202 = vpop.xlane.xlu0 %201
        %v203 = vadd.f32 %v183, %v184
        %204 = vadd.xlane.f32.xlu0 %v203
        %v205 = vpop.xlane.xlu0 %204
        %v206 = vadd.f32 %v185, %v186
        %207 = vadd.xlane.f32.xlu0 %v206
        %v208 = vpop.xlane.xlu0 %207
        %v209 = vadd.f32 %v187, %v188
        %210 = vadd.xlane.f32.xlu0 %v209
        %v211 = vpop.xlane.xlu0 %210
        %v212 = vadd.f32 %v189, %v190
        %213 = vadd.xlane.f32.xlu0 %v212
        %v214 = vpop.xlane.xlu0 %213
        %v215 = vrcp.pop 256.0
        %v216 = vmul.f32 %v193, %v215
        %v217 = vmul.f32 %v196, %v215
        %v218 = vmul.f32 %v199, %v215
        %v219 = vmul.f32 %v202, %v215
        %v220 = vmul.f32 %v205, %v215
        %v221 = vmul.f32 %v208, %v215
        %v222 = vmul.f32 %v211, %v215
        %v223 = vmul.f32 %v214, %v215
        %v224 = vsub.f32 %v175, %v216
        %v225 = vsub.f32 %v176, %v216
        %v226 = vsub.f32 %v177, %v217
        %v227 = vsub.f32 %v178, %v217
        %v228 = vsub.f32 %v179, %v218
        %v229 = vsub.f32 %v180, %v218
        %v230 = vsub.f32 %v181, %v219
        %v231 = vsub.f32 %v182, %v219
        %v232 = vsub.f32 %v183, %v220
        %v233 = vsub.f32 %v184, %v220
        %v234 = vsub.f32 %v185, %v221
        %v235 = vsub.f32 %v186, %v221
        %v236 = vsub.f32 %v187, %v222
        %v237 = vsub.f32 %v188, %v222
        %v238 = vsub.f32 %v189, %v223
        %v239 = vsub.f32 %v190, %v223
        %v240 = vmul.f32 %v224, %v224
        %v241 = vmul.f32 %v225, %v225
        %v242 = vmul.f32 %v226, %v226
        %v243 = vmul.f32 %v227, %v227
        %v244 = vmul.f32 %v228, %v228
        %v245 = vmul.f32 %v229, %v229
        %v246 = vmul.f32 %v230, %v230
        %v247 = vmul.f32 %v231, %v231
        %v248 = vmul.f32 %v232, %v232
        %v249 = vmul.f32 %v233, %v233
        %v250 = vmul.f32 %v234, %v234
        %v251 = vmul.f32 %v235, %v235
        %v252 = vmul.f32 %v236, %v236
        %v253 = vmul.f32 %v237, %v237
        %v254 = vmul.f32 %v238, %v238
        %v255 = vmul.f32 %v239, %v239
        %v256 = vadd.f32 %v240, %v241
        %257 = vadd.xlane.f32.xlu0 %v256
        %v258 = vpop.xlane.xlu0 %257
        %v259 = vadd.f32 %v242, %v243
        %260 = vadd.xlane.f32.xlu0 %v259
        %v261 = vpop.xlane.xlu0 %260
        %v262 = vadd.f32 %v244, %v245
        %263 = vadd.xlane.f32.xlu0 %v262
        %v264 = vpop.xlane.xlu0 %263
        %v265 = vadd.f32 %v246, %v247
        %266 = vadd.xlane.f32.xlu0 %v265
        %v267 = vpop.xlane.xlu0 %266
        %v268 = vadd.f32 %v248, %v249
        %269 = vadd.xlane.f32.xlu0 %v268
        %v270 = vpop.xlane.xlu0 %269
        %v271 = vadd.f32 %v250, %v251
        %272 = vadd.xlane.f32.xlu0 %v271
        %v273 = vpop.xlane.xlu0 %272
        %v274 = vadd.f32 %v252, %v253
        %275 = vadd.xlane.f32.xlu0 %v274
        %v276 = vpop.xlane.xlu0 %275
        %v277 = vadd.f32 %v254, %v255
        %278 = vadd.xlane.f32.xlu0 %v277
        %v279 = vpop.xlane.xlu0 %278
        %v280 = vmul.f32 %v258, %v215
        %v281 = vmul.f32 %v261, %v215
        %v282 = vmul.f32 %v264, %v215
        %v283 = vmul.f32 %v267, %v215
        %v284 = vmul.f32 %v270, %v215
        %v285 = vmul.f32 %v273, %v215
        %v286 = vmul.f32 %v276, %v215
        %v287 = vmul.f32 %v279, %v215
        %v288 = vadd.f32 %v280, 1e-06
        %v289 = vadd.f32 %v281, 1e-06
        %v290 = vadd.f32 %v282, 1e-06
        %v291 = vadd.f32 %v283, 1e-06
        %v292 = vadd.f32 %v284, 1e-06
        %v293 = vadd.f32 %v285, 1e-06
        %v294 = vadd.f32 %v286, 1e-06
        %v295 = vadd.f32 %v287, 1e-06
        %v296 = vrsqrt.pop %v288
        %v297 = vrsqrt.pop %v289
        %v298 = vrsqrt.pop %v290
        %v299 = vrsqrt.pop %v291
        %v300 = vrsqrt.pop %v292
        %v301 = vrsqrt.pop %v293
        %v302 = vrsqrt.pop %v294
        %v303 = vrsqrt.pop %v295
        %v304 = vmul.f32 %v224, %v296
        %v305 = vmul.f32 %v225, %v296
        %v306 = vmul.f32 %v226, %v297
        %v307 = vmul.f32 %v227, %v297
        %v308 = vmul.f32 %v228, %v298
        %v309 = vmul.f32 %v229, %v298
        %v310 = vmul.f32 %v230, %v299
        %v311 = vmul.f32 %v231, %v299
        %v312 = vmul.f32 %v232, %v300
        %v313 = vmul.f32 %v233, %v300
        %v314 = vmul.f32 %v234, %v301
        %v315 = vmul.f32 %v235, %v301
        %v316 = vmul.f32 %v236, %v302
        %v317 = vmul.f32 %v237, %v302
        %v318 = vmul.f32 %v238, %v303
        %v319 = vmul.f32 %v239, %v303
        %v320 = vpack.c.bf16 %v306, %v304
        %v321 = vpack.c.bf16 %v307, %v305
        %v322 = vpack.c.bf16 %v310, %v308
        %v323 = vpack.c.bf16 %v311, %v309
        %v324 = vpack.c.bf16 %v314, %v312
        %v325 = vpack.c.bf16 %v315, %v313
        %v326 = vpack.c.bf16 %v318, %v316
        %v327 = vpack.c.bf16 %v319, %v317
        %v328 = vld [vmem:[%s1] sm:$0xff]
        %v329 = vld [vmem:[%s1 + $0x8] sm:$0xff]
        %v330 = vld [vmem:[%s1 + $0x10] sm:$0xff]
        %v331 = vld [vmem:[%s1 + $0x18] sm:$0xff]
        %v332 = vld [vmem:[%s1 + $0x20] sm:$0xff]
        %v333 = vld [vmem:[%s1 + $0x28] sm:$0xff]
        %v334 = vld [vmem:[%s1 + $0x30] sm:$0xff]
        %v335 = vld [vmem:[%s1 + $0x38] sm:$0xff]
        %v336 = vld [vmem:[%s1 + $0x40] sm:$0xff]
        %v337 = vld [vmem:[%s1 + $0x48] sm:$0xff]
        %v338 = vld [vmem:[%s1 + $0x50] sm:$0xff]
        %v339 = vld [vmem:[%s1 + $0x58] sm:$0xff]
        %v340 = vld [vmem:[%s1 + $0x60] sm:$0xff]
        %v341 = vld [vmem:[%s1 + $0x68] sm:$0xff]
        %v342 = vld [vmem:[%s1 + $0x70] sm:$0xff]
        %v343 = vld [vmem:[%s1 + $0x78] sm:$0xff]
        %v344 = vld [vmem:[%s1 + $0x80] sm:$0xff]
        %v345 = vld [vmem:[%s1 + $0x88] sm:$0xff]
        %v346 = vld [vmem:[%s1 + $0x90] sm:$0xff]
        %v347 = vld [vmem:[%s1 + $0x98] sm:$0xff]
        %v348 = vld [vmem:[%s1 + $0xa0] sm:$0xff]
        %v349 = vld [vmem:[%s1 + $0xa8] sm:$0xff]
        %v350 = vld [vmem:[%s1 + $0xb0] sm:$0xff]
        %v351 = vld [vmem:[%s1 + $0xb8] sm:$0xff]
        %v352 = vld [vmem:[%s1 + $0xc0] sm:$0xff]
        %v353 = vld [vmem:[%s1 + $0xc8] sm:$0xff]
        %v354 = vld [vmem:[%s1 + $0xd0] sm:$0xff]
        %v355 = vld [vmem:[%s1 + $0xd8] sm:$0xff]
        %v356 = vld [vmem:[%s1 + $0xe0] sm:$0xff]
        %v357 = vld [vmem:[%s1 + $0xe8] sm:$0xff]
        %v358 = vld [vmem:[%s1 + $0xf0] sm:$0xff]
        %v359 = vld [vmem:[%s1 + $0xf8] sm:$0xff]
        %v360 = vld [vmem:[%s1 + $0x100] sm:$0xff]
        %v361 = vld [vmem:[%s1 + $0x108] sm:$0xff]
        %v362 = vld [vmem:[%s1 + $0x110] sm:$0xff]
        %v363 = vld [vmem:[%s1 + $0x118] sm:$0xff]
        %v364 = vld [vmem:[%s1 + $0x120] sm:$0xff]
        %v365 = vld [vmem:[%s1 + $0x128] sm:$0xff]
        %v366 = vld [vmem:[%s1 + $0x130] sm:$0xff]
        %v367 = vld [vmem:[%s1 + $0x138] sm:$0xff]
        %v368 = vld [vmem:[%s1 + $0x140] sm:$0xff]
        %v369 = vld [vmem:[%s1 + $0x148] sm:$0xff]
        %v370 = vld [vmem:[%s1 + $0x150] sm:$0xff]
        %v371 = vld [vmem:[%s1 + $0x158] sm:$0xff]
        %v372 = vld [vmem:[%s1 + $0x160] sm:$0xff]
        %v373 = vld [vmem:[%s1 + $0x168] sm:$0xff]
        %v374 = vld [vmem:[%s1 + $0x170] sm:$0xff]
        %v375 = vld [vmem:[%s1 + $0x178] sm:$0xff]
        %v376 = vld [vmem:[%s1 + $0x180] sm:$0xff]
        %v377 = vld [vmem:[%s1 + $0x188] sm:$0xff]
        %v378 = vld [vmem:[%s1 + $0x190] sm:$0xff]
        %v379 = vld [vmem:[%s1 + $0x198] sm:$0xff]
        %v380 = vld [vmem:[%s1 + $0x1a0] sm:$0xff]
        %v381 = vld [vmem:[%s1 + $0x1a8] sm:$0xff]
        %v382 = vld [vmem:[%s1 + $0x1b0] sm:$0xff]
        %v383 = vld [vmem:[%s1 + $0x1b8] sm:$0xff]
        %v384 = vld [vmem:[%s1 + $0x1c0] sm:$0xff]
        %v385 = vld [vmem:[%s1 + $0x1c8] sm:$0xff]
        %v386 = vld [vmem:[%s1 + $0x1d0] sm:$0xff]
        %v387 = vld [vmem:[%s1 + $0x1d8] sm:$0xff]
        %v388 = vld [vmem:[%s1 + $0x1e0] sm:$0xff]
        %v389 = vld [vmem:[%s1 + $0x1e8] sm:$0xff]
        %v390 = vld [vmem:[%s1 + $0x1f0] sm:$0xff]
        %v391 = vld [vmem:[%s1 + $0x1f8] sm:$0xff]
        %v392 = vld [vmem:[%s2] sm:$0xf]
        %v394 = vlaneseq
        %v395 = vshrl.u32 %v394, 7
        %v396 = vsub.s32 0, %v395
        %v397 = vrot.slane %v392, %v396
        %v398 = vlaneseq
        %v399 = vshrl.u32 %v398, 7
        %v400 = vsub.s32 1, %v399
        %v401 = vrot.slane %v392, %v400
        %v402 = vlaneseq
        %v403 = vshrl.u32 %v402, 7
        %v404 = vsub.s32 2, %v403
        %v405 = vrot.slane %v392, %v404
        %v406 = vlaneseq
        %v407 = vshrl.u32 %v406, 7
        %v408 = vsub.s32 3, %v407
        %v409 = vrot.slane %v392, %v408
        %v478 = vunpack.c.l.b16 %v328
        %v479 = vunpack.c.h.b16 %v328
        %v480 = vunpack.c.l.b16 %v329
        %v481 = vunpack.c.h.b16 %v329
        %v482 = vunpack.c.l.b16 %v330
        %v483 = vunpack.c.h.b16 %v330
        %v484 = vunpack.c.l.b16 %v331
        %v485 = vunpack.c.h.b16 %v331
        %v486 = vunpack.c.l.b16 %v332
        %v487 = vunpack.c.h.b16 %v332
        %v488 = vunpack.c.l.b16 %v333
        %v489 = vunpack.c.h.b16 %v333
        %v490 = vunpack.c.l.b16 %v334
        %v491 = vunpack.c.h.b16 %v334
        %v492 = vunpack.c.l.b16 %v335
        %v493 = vunpack.c.h.b16 %v335
        %v494 = vunpack.c.l.b16 %v336
        %v495 = vunpack.c.h.b16 %v336
        %v496 = vunpack.c.l.b16 %v337
        %v497 = vunpack.c.h.b16 %v337
        %v498 = vunpack.c.l.b16 %v338
        %v499 = vunpack.c.h.b16 %v338
        %v500 = vunpack.c.l.b16 %v339
        %v501 = vunpack.c.h.b16 %v339
        %v502 = vunpack.c.l.b16 %v340
        %v503 = vunpack.c.h.b16 %v340
        %v504 = vunpack.c.l.b16 %v341
        %v505 = vunpack.c.h.b16 %v341
        %v506 = vunpack.c.l.b16 %v342
        %v507 = vunpack.c.h.b16 %v342
        %v508 = vunpack.c.l.b16 %v343
        %v509 = vunpack.c.h.b16 %v343
        %v510 = vunpack.c.l.b16 %v344
        %v511 = vunpack.c.h.b16 %v344
        %v512 = vunpack.c.l.b16 %v345
        %v513 = vunpack.c.h.b16 %v345
        %v514 = vunpack.c.l.b16 %v346
        %v515 = vunpack.c.h.b16 %v346
        %v516 = vunpack.c.l.b16 %v347
        %v517 = vunpack.c.h.b16 %v347
        %v518 = vunpack.c.l.b16 %v348
        %v519 = vunpack.c.h.b16 %v348
        %v520 = vunpack.c.l.b16 %v349
        %v521 = vunpack.c.h.b16 %v349
        %v522 = vunpack.c.l.b16 %v350
        %v523 = vunpack.c.h.b16 %v350
        %v524 = vunpack.c.l.b16 %v351
        %v525 = vunpack.c.h.b16 %v351
        %v526 = vunpack.c.l.b16 %v352
        %v527 = vunpack.c.h.b16 %v352
        %v528 = vunpack.c.l.b16 %v353
        %v529 = vunpack.c.h.b16 %v353
        %v530 = vunpack.c.l.b16 %v354
        %v531 = vunpack.c.h.b16 %v354
        %v532 = vunpack.c.l.b16 %v355
        %v533 = vunpack.c.h.b16 %v355
        %v534 = vunpack.c.l.b16 %v356
        %v535 = vunpack.c.h.b16 %v356
        %v536 = vunpack.c.l.b16 %v357
        %v537 = vunpack.c.h.b16 %v357
        %v538 = vunpack.c.l.b16 %v358
        %v539 = vunpack.c.h.b16 %v358
        %v540 = vunpack.c.l.b16 %v359
        %v541 = vunpack.c.h.b16 %v359
        %v542 = vunpack.c.l.b16 %v360
        %v543 = vunpack.c.h.b16 %v360
        %v544 = vunpack.c.l.b16 %v361
        %v545 = vunpack.c.h.b16 %v361
        %v546 = vunpack.c.l.b16 %v362
        %v547 = vunpack.c.h.b16 %v362
        %v548 = vunpack.c.l.b16 %v363
        %v549 = vunpack.c.h.b16 %v363
        %v550 = vunpack.c.l.b16 %v364
        %v551 = vunpack.c.h.b16 %v364
        %v552 = vunpack.c.l.b16 %v365
        %v553 = vunpack.c.h.b16 %v365
        %v554 = vunpack.c.l.b16 %v366
        %v555 = vunpack.c.h.b16 %v366
        %v556 = vunpack.c.l.b16 %v367
        %v557 = vunpack.c.h.b16 %v367
        %v558 = vunpack.c.l.b16 %v368
        %v559 = vunpack.c.h.b16 %v368
        %v560 = vunpack.c.l.b16 %v369
        %v561 = vunpack.c.h.b16 %v369
        %v562 = vunpack.c.l.b16 %v370
        %v563 = vunpack.c.h.b16 %v370
        %v564 = vunpack.c.l.b16 %v371
        %v565 = vunpack.c.h.b16 %v371
        %v566 = vunpack.c.l.b16 %v372
        %v567 = vunpack.c.h.b16 %v372
        %v568 = vunpack.c.l.b16 %v373
        %v569 = vunpack.c.h.b16 %v373
        %v570 = vunpack.c.l.b16 %v374
        %v571 = vunpack.c.h.b16 %v374
        %v572 = vunpack.c.l.b16 %v375
        %v573 = vunpack.c.h.b16 %v375
        %v574 = vunpack.c.l.b16 %v376
        %v575 = vunpack.c.h.b16 %v376
        %v576 = vunpack.c.l.b16 %v377
        %v577 = vunpack.c.h.b16 %v377
        %v578 = vunpack.c.l.b16 %v378
        %v579 = vunpack.c.h.b16 %v378
        %v580 = vunpack.c.l.b16 %v379
        %v581 = vunpack.c.h.b16 %v379
        %v582 = vunpack.c.l.b16 %v380
        %v583 = vunpack.c.h.b16 %v380
        %v584 = vunpack.c.l.b16 %v381
        %v585 = vunpack.c.h.b16 %v381
        %v586 = vunpack.c.l.b16 %v382
        %v587 = vunpack.c.h.b16 %v382
        %v588 = vunpack.c.l.b16 %v383
        %v589 = vunpack.c.h.b16 %v383
        %v590 = vunpack.c.l.b16 %v384
        %v591 = vunpack.c.h.b16 %v384
        %v592 = vunpack.c.l.b16 %v385
        %v593 = vunpack.c.h.b16 %v385
        %v594 = vunpack.c.l.b16 %v386
        %v595 = vunpack.c.h.b16 %v386
        %v596 = vunpack.c.l.b16 %v387
        %v597 = vunpack.c.h.b16 %v387
        %v598 = vunpack.c.l.b16 %v388
        %v599 = vunpack.c.h.b16 %v388
        %v600 = vunpack.c.l.b16 %v389
        %v601 = vunpack.c.h.b16 %v389
        %v602 = vunpack.c.l.b16 %v390
        %v603 = vunpack.c.h.b16 %v390
        %v604 = vunpack.c.l.b16 %v391
        %v605 = vunpack.c.h.b16 %v391
        %v606 = vpack.c.b16 %v482, %v478
        %v607 = vpack.c.b16 %v483, %v479
        %v608 = vpack.c.b16 %v484, %v480
        %v609 = vpack.c.b16 %v485, %v481
        %v610 = vpack.c.b16 %v490, %v486
        %v611 = vpack.c.b16 %v491, %v487
        %v612 = vpack.c.b16 %v492, %v488
        %v613 = vpack.c.b16 %v493, %v489
        %v614 = vpack.c.b16 %v498, %v494
        %v615 = vpack.c.b16 %v499, %v495
        %v616 = vpack.c.b16 %v500, %v496
        %v617 = vpack.c.b16 %v501, %v497
        %v618 = vpack.c.b16 %v506, %v502
        %v619 = vpack.c.b16 %v507, %v503
        %v620 = vpack.c.b16 %v508, %v504
        %v621 = vpack.c.b16 %v509, %v505
        %v622 = vpack.c.b16 %v514, %v510
        %v623 = vpack.c.b16 %v515, %v511
        %v624 = vpack.c.b16 %v516, %v512
        %v625 = vpack.c.b16 %v517, %v513
        %v626 = vpack.c.b16 %v522, %v518
        %v627 = vpack.c.b16 %v523, %v519
        %v628 = vpack.c.b16 %v524, %v520
        %v629 = vpack.c.b16 %v525, %v521
        %v630 = vpack.c.b16 %v530, %v526
        %v631 = vpack.c.b16 %v531, %v527
        %v632 = vpack.c.b16 %v532, %v528
        %v633 = vpack.c.b16 %v533, %v529
        %v634 = vpack.c.b16 %v538, %v534
        %v635 = vpack.c.b16 %v539, %v535
        %v636 = vpack.c.b16 %v540, %v536
        %v637 = vpack.c.b16 %v541, %v537
        %v638 = vpack.c.b16 %v546, %v542
        %v639 = vpack.c.b16 %v547, %v543
        %v640 = vpack.c.b16 %v548, %v544
        %v641 = vpack.c.b16 %v549, %v545
        %v642 = vpack.c.b16 %v554, %v550
        %v643 = vpack.c.b16 %v555, %v551
        %v644 = vpack.c.b16 %v556, %v552
        %v645 = vpack.c.b16 %v557, %v553
        %v646 = vpack.c.b16 %v562, %v558
        %v647 = vpack.c.b16 %v563, %v559
        %v648 = vpack.c.b16 %v564, %v560
        %v649 = vpack.c.b16 %v565, %v561
        %v650 = vpack.c.b16 %v570, %v566
        %v651 = vpack.c.b16 %v571, %v567
        %v652 = vpack.c.b16 %v572, %v568
        %v653 = vpack.c.b16 %v573, %v569
        %v654 = vpack.c.b16 %v578, %v574
        %v655 = vpack.c.b16 %v579, %v575
        %v656 = vpack.c.b16 %v580, %v576
        %v657 = vpack.c.b16 %v581, %v577
        %v658 = vpack.c.b16 %v586, %v582
        %v659 = vpack.c.b16 %v587, %v583
        %v660 = vpack.c.b16 %v588, %v584
        %v661 = vpack.c.b16 %v589, %v585
        %v662 = vpack.c.b16 %v594, %v590
        %v663 = vpack.c.b16 %v595, %v591
        %v664 = vpack.c.b16 %v596, %v592
        %v665 = vpack.c.b16 %v597, %v593
        %v666 = vpack.c.b16 %v602, %v598
        %v667 = vpack.c.b16 %v603, %v599
        %v668 = vpack.c.b16 %v604, %v600
        %v669 = vpack.c.b16 %v605, %v601
        %734 = vmatprep.subr.bf16.mxu0 %v607
        %735 = vmatpush1.bf16.msra.mxu0 %v606
        %736 = vmatprep.subr.bf16.mxu0 %v611
        %737 = vmatpush1.bf16.msra.mxu0 %v610
        %738 = vmatprep.subr.bf16.mxu0 %v615
        %739 = vmatpush1.bf16.msra.mxu0 %v614
        %740 = vmatprep.subr.bf16.mxu0 %v619
        %741 = vmatpush1.bf16.msra.mxu0 %v618
        %742 = vmatprep.subr.bf16.mxu0 %v623
        %743 = vmatpush1.bf16.msra.mxu0 %v622
        %744 = vmatprep.subr.bf16.mxu0 %v627
        %745 = vmatpush1.bf16.msra.mxu0 %v626
        %746 = vmatprep.subr.bf16.mxu0 %v631
        %747 = vmatpush1.bf16.msra.mxu0 %v630
        %748 = vmatprep.subr.bf16.mxu0 %v635
        %749 = vmatpush1.bf16.msra.mxu0 %v634
        %750 = vmatprep.subr.bf16.mxu0 %v639
        %751 = vmatpush1.bf16.msra.mxu0 %v638
        %752 = vmatprep.subr.bf16.mxu0 %v643
        %753 = vmatpush1.bf16.msra.mxu0 %v642
        %754 = vmatprep.subr.bf16.mxu0 %v647
        %755 = vmatpush1.bf16.msra.mxu0 %v646
        %756 = vmatprep.subr.bf16.mxu0 %v651
        %757 = vmatpush1.bf16.msra.mxu0 %v650
        %758 = vmatprep.subr.bf16.mxu0 %v655
        %759 = vmatpush1.bf16.msra.mxu0 %v654
        %760 = vmatprep.subr.bf16.mxu0 %v659
        %761 = vmatpush1.bf16.msra.mxu0 %v658
        %762 = vmatprep.subr.bf16.mxu0 %v663
        %763 = vmatpush1.bf16.msra.mxu0 %v662
        %764 = vmatprep.subr.bf16.mxu0 %v667
        %765 = vmatpush1.bf16.msra.mxu0 %v666
        %766 = vmatprep.mubr.bf16.mxu0 %v321
        %767 = vmatmul.mubr.bf16.gmra.mrb[0].mxu0 %v320
        %v768 = vpop.f32.mrb[0].mxu0
        %v769 = vadd.f32 %v397, %v768
        %v770 = vpop.f32.mrb[0].mxu0
        %v771 = vadd.f32 %v401, %v770
        %v772 = vpop.f32.mrb[0].mxu0
        %v773 = vadd.f32 %v397, %v772
        %v774 = vpop.f32.mrb[0].mxu0
        %v775 = vadd.f32 %v401, %v774
        %776 = vmatprep.mubr.bf16.mxu0 %v323
        %777 = vmatmul.mubr.bf16.gmra.mrb[0].mxu0 %v322
        %v778 = vpop.f32.mrb[0].mxu0
        %v779 = vadd.f32 %v397, %v778
        %v780 = vpop.f32.mrb[0].mxu0
        %v781 = vadd.f32 %v401, %v780
        %v782 = vpop.f32.mrb[0].mxu0
        %v783 = vadd.f32 %v397, %v782
        %v784 = vpop.f32.mrb[0].mxu0
        %v785 = vadd.f32 %v401, %v784
        %786 = vmatprep.mubr.bf16.mxu0 %v325
        %787 = vmatmul.mubr.bf16.gmra.mrb[0].mxu0 %v324
        %v788 = vpop.f32.mrb[0].mxu0
        %v789 = vadd.f32 %v397, %v788
        %v790 = vpop.f32.mrb[0].mxu0
        %v791 = vadd.f32 %v401, %v790
        %v792 = vpop.f32.mrb[0].mxu0
        %v793 = vadd.f32 %v397, %v792
        %v794 = vpop.f32.mrb[0].mxu0
        %v795 = vadd.f32 %v401, %v794
        %796 = vmatprep.mubr.bf16.mxu0 %v327
        %797 = vmatmul.mubr.bf16.gmra.mrb[0].mxu0 %v326
        %v798 = vpop.f32.mrb[0].mxu0
        %v799 = vadd.f32 %v397, %v798
        %v800 = vpop.f32.mrb[0].mxu0
        %v801 = vadd.f32 %v401, %v800
        %v802 = vpop.f32.mrb[0].mxu0
        %v803 = vadd.f32 %v397, %v802
        %v804 = vpop.f32.mrb[0].mxu0
        %v805 = vadd.f32 %v401, %v804
        %806 = vdwg.mxu0
        %807 = vmatprep.subr.bf16.mxu0 %v609
        %808 = vmatpush1.bf16.msra.mxu0 %v608
        %809 = vmatprep.subr.bf16.mxu0 %v613
        %810 = vmatpush1.bf16.msra.mxu0 %v612
        %811 = vmatprep.subr.bf16.mxu0 %v617
        %812 = vmatpush1.bf16.msra.mxu0 %v616
        %813 = vmatprep.subr.bf16.mxu0 %v621
        %814 = vmatpush1.bf16.msra.mxu0 %v620
        %815 = vmatprep.subr.bf16.mxu0 %v625
        %816 = vmatpush1.bf16.msra.mxu0 %v624
        %817 = vmatprep.subr.bf16.mxu0 %v629
        %818 = vmatpush1.bf16.msra.mxu0 %v628
        %819 = vmatprep.subr.bf16.mxu0 %v633
        %820 = vmatpush1.bf16.msra.mxu0 %v632
        %821 = vmatprep.subr.bf16.mxu0 %v637
        %822 = vmatpush1.bf16.msra.mxu0 %v636
        %823 = vmatprep.subr.bf16.mxu0 %v641
        %824 = vmatpush1.bf16.msra.mxu0 %v640
        %825 = vmatprep.subr.bf16.mxu0 %v645
        %826 = vmatpush1.bf16.msra.mxu0 %v644
        %827 = vmatprep.subr.bf16.mxu0 %v649
        %828 = vmatpush1.bf16.msra.mxu0 %v648
        %829 = vmatprep.subr.bf16.mxu0 %v653
        %830 = vmatpush1.bf16.msra.mxu0 %v652
        %831 = vmatprep.subr.bf16.mxu0 %v657
        %832 = vmatpush1.bf16.msra.mxu0 %v656
        %833 = vmatprep.subr.bf16.mxu0 %v661
        %834 = vmatpush1.bf16.msra.mxu0 %v660
        %835 = vmatprep.subr.bf16.mxu0 %v665
        %836 = vmatpush1.bf16.msra.mxu0 %v664
        %837 = vmatprep.subr.bf16.mxu0 %v669
        %838 = vmatpush1.bf16.msra.mxu0 %v668
        %839 = vmatprep.mubr.bf16.mxu0 %v321
        %840 = vmatmul.mubr.bf16.gmra.mrb[0].mxu0 %v320
        %v841 = vpop.f32.mrb[0].mxu0
        %v842 = vadd.f32 %v405, %v841
        %v843 = vpop.f32.mrb[0].mxu0
        %v844 = vadd.f32 %v409, %v843
        %v845 = vpop.f32.mrb[0].mxu0
        %v846 = vadd.f32 %v405, %v845
        %v847 = vpop.f32.mrb[0].mxu0
        %v848 = vadd.f32 %v409, %v847
        %849 = vmatprep.mubr.bf16.mxu0 %v323
        %850 = vmatmul.mubr.bf16.gmra.mrb[0].mxu0 %v322
        %v851 = vpop.f32.mrb[0].mxu0
        %v852 = vadd.f32 %v405, %v851
        %v853 = vpop.f32.mrb[0].mxu0
        %v854 = vadd.f32 %v409, %v853
        %v855 = vpop.f32.mrb[0].mxu0
        %v856 = vadd.f32 %v405, %v855
        %v857 = vpop.f32.mrb[0].mxu0
        %v858 = vadd.f32 %v409, %v857
        %859 = vmatprep.mubr.bf16.mxu0 %v325
        %860 = vmatmul.mubr.bf16.gmra.mrb[0].mxu0 %v324
        %v861 = vpop.f32.mrb[0].mxu0
        %v862 = vadd.f32 %v405, %v861
        %v863 = vpop.f32.mrb[0].mxu0
        %v864 = vadd.f32 %v409, %v863
        %v865 = vpop.f32.mrb[0].mxu0
        %v866 = vadd.f32 %v405, %v865
        %v867 = vpop.f32.mrb[0].mxu0
        %v868 = vadd.f32 %v409, %v867
        %869 = vmatprep.mubr.bf16.mxu0 %v327
        %870 = vmatmul.mubr.bf16.gmra.mrb[0].mxu0 %v326
        %v871 = vpop.f32.mrb[0].mxu0
        %v872 = vadd.f32 %v405, %v871
        %v873 = vpop.f32.mrb[0].mxu0
        %v874 = vadd.f32 %v409, %v873
        %v875 = vpop.f32.mrb[0].mxu0
        %v876 = vadd.f32 %v405, %v875
        %v877 = vpop.f32.mrb[0].mxu0
        %v878 = vadd.f32 %v409, %v877
        %879 = vdwg.mxu0
        %880 = vst [vmem:[%s166] sm:$0xff] %v769
        %881 = vst [vmem:[%s166 + $0x8] sm:$0xff] %v771
        %882 = vst [vmem:[%s166 + $0x10] sm:$0xff] %v842
        %883 = vst [vmem:[%s166 + $0x18] sm:$0xff] %v844
        %884 = vst [vmem:[%s166 + $0x20] sm:$0xff] %v773
        %885 = vst [vmem:[%s166 + $0x28] sm:$0xff] %v775
        %886 = vst [vmem:[%s166 + $0x30] sm:$0xff] %v846
        %887 = vst [vmem:[%s166 + $0x38] sm:$0xff] %v848
        %888 = vst [vmem:[%s166 + $0x40] sm:$0xff] %v779
        %889 = vst [vmem:[%s166 + $0x48] sm:$0xff] %v781
        %890 = vst [vmem:[%s166 + $0x50] sm:$0xff] %v852
        %891 = vst [vmem:[%s166 + $0x58] sm:$0xff] %v854
        %892 = vst [vmem:[%s166 + $0x60] sm:$0xff] %v783
        %893 = vst [vmem:[%s166 + $0x68] sm:$0xff] %v785
        %894 = vst [vmem:[%s166 + $0x70] sm:$0xff] %v856
        %895 = vst [vmem:[%s166 + $0x78] sm:$0xff] %v858
        %896 = vst [vmem:[%s166 + $0x80] sm:$0xff] %v789
        %897 = vst [vmem:[%s166 + $0x88] sm:$0xff] %v791
        %898 = vst [vmem:[%s166 + $0x90] sm:$0xff] %v862
        %899 = vst [vmem:[%s166 + $0x98] sm:$0xff] %v864
        %900 = vst [vmem:[%s166 + $0xa0] sm:$0xff] %v793
        %901 = vst [vmem:[%s166 + $0xa8] sm:$0xff] %v795
        %902 = vst [vmem:[%s166 + $0xb0] sm:$0xff] %v866
        %903 = vst [vmem:[%s166 + $0xb8] sm:$0xff] %v868
        %904 = vst [vmem:[%s166 + $0xc0] sm:$0xff] %v799
        %905 = vst [vmem:[%s166 + $0xc8] sm:$0xff] %v801
        %906 = vst [vmem:[%s166 + $0xd0] sm:$0xff] %v872
        %907 = vst [vmem:[%s166 + $0xd8] sm:$0xff] %v874
        %908 = vst [vmem:[%s166 + $0xe0] sm:$0xff] %v803
        %909 = vst [vmem:[%s166 + $0xe8] sm:$0xff] %v805
        %910 = vst [vmem:[%s166 + $0xf0] sm:$0xff] %v876
        %911 = vst [vmem:[%s166 + $0xf8] sm:$0xff] %v878
        %s912 = sand.u32 %s93, 1
        %s913 = scalar_lea.sflag [#allocation3], %s912
        %s914 = sand.u32 %s93, 1
        %s915 = smul.addr %s914, 256
        %s916 = scalar_lea.vmem [#allocation2], %s915
        // Predicated region
        $region33: #{prenorm_forward.1} parent=31 // pred_check
          %p917 = pneg %p103
        $region34: #{prenorm_forward.1} parent=31 // pred_check_branch
          %919 = sbr.rel (%p917) target = $region36
        $region35: #{prenorm_forward.1} parent=31 // pred_region
          %s920 = smul.u32 8, %s17
          %s922 = ssub.s32 4096, 4096
          %923 = vsyncadd %s913, %s922
          %s924 = smul.addr %s920, 4
          %s925 = smul.addr %s924, 128
          %s926 = scalar_lea.hbm %s3, %s925
          %s927 = sshll.u32 %s916, 4
          %s928 = int_to_ptr.vmem [resolvable:$true] %s927
          %933 = dma.vmem_to_hbm [thread:$0]  %s928, 4096, %s926, %s913, 512, 512, 32
        $region36: #{prenorm_forward.1} parent=31 // pred_fallthru
          _
      $region32: #{prenorm_forward.1} parent=5 // pred_fallthru
        _
      %p934 = scmp.le.s32.totalorder 2, %s12
      // Predicated region
      $region37: #{prenorm_forward.1} parent=5 // pred_check
        %p935 = pneg %p934
      $region38: #{prenorm_forward.1} parent=5 // pred_check_branch
        %937 = sbr.rel (%p935) target = $region40
      $region39: #{prenorm_forward.1} parent=5 // pred_region
        %s938 = ssub.s32 %s12, 2
        // Predicated region
        $region41: #{prenorm_forward.1} parent=39 // pred_check
          %p939 = pneg %p109
        $region42: #{prenorm_forward.1} parent=39 // pred_check_branch
          %941 = sbr.rel (%p939) target = $region44
        $region43: #{prenorm_forward.1} parent=39 // pred_region
          %s942 = sand.u32 %s94, 1
          %s943 = scalar_lea.sflag [#allocation3], %s942
          %s944 = sand.u32 %s94, 1
          %s945 = smul.addr %s944, 256
          %s946 = scalar_lea.vmem [#allocation2], %s945
          %947 = dma.done %s943, 4096
        $region44: #{prenorm_forward.1} parent=39 // pred_fallthru
          _
      $region40: #{prenorm_forward.1} parent=5 // pred_fallthru
        _
    $region6: #{prenorm_forward.1} parent=1 // loop_footer
      %s16 = sadd.s32 1, %s12
    $region7: #{prenorm_forward.1} parent=1 // loop_footer_branch
      %11 = sbr.rel target = $region3
    $region8: #{prenorm_forward.1} parent=1 // loop_exit
      _
    %948 = vsyncpa [#allocation3], 1
    %s949 = scalar_lea.sflag [#allocation3], 1
    %950 = vsyncpa %s949, 1

</llo_original>
